<compile_context>
chip_gen: v5e
topology: v5e:2x2
jax: 0.10.0
libtpu: 0.0.40
codegen_flags: <defaults>
</compile_context>

<pallas_src>
import jax
import jax.numpy as jnp
import numpy as np
from jax.experimental import pallas as pl
from jax.experimental.pallas import tpu as pltpu


# --------------------------------------------------------------------------
# Kernel
# --------------------------------------------------------------------------
def _rope_kernel(cos_ref, sin_ref, q_ref, k_ref, oq_ref, ok_ref):
    # cos_ref/sin_ref: (block_s, H*D) f32, duplicated-cos / signed-sin layout.
    # q_ref/k_ref/oq_ref/ok_ref: (block_s, H*D), interleaved (real, imag) pairs
    # on the lane axis (batch dim squeezed by the BlockSpec).
    c = cos_ref[...]
    s = sin_ref[...]
    hd = c.shape[-1]

    # Single-row lane-parity mask; broadcast happens inside the select.
    lane = jax.lax.broadcasted_iota(jnp.int32, (1, hd), 1)
    is_even = (lane % 2) == 0

    def rotate(x_ref, o_ref):
        x = x_ref[...].astype(jnp.float32)
        # Pair swap within each (real, imag) lane pair:
        #   even lanes take their right neighbour (the imag part),
        #   odd lanes take their left neighbour (the real part).
        # Non-negative shifts (hd-1 == -1 mod hd).  Wrap-around lanes are never
        # selected, so there is no boundary / head-crossing issue.
        x_next = pltpu.roll(x, shift=hd - 1, axis=1)   # x_next[l] = x[l + 1]
        x_prev = pltpu.roll(x, shift=1, axis=1)        # x_prev[l] = x[l - 1]
        x_swap = jnp.where(is_even, x_next, x_prev)
        o_ref[...] = (x * c + x_swap * s).astype(o_ref.dtype)

    rotate(q_ref, oq_ref)
    rotate(k_ref, ok_ref)


# --------------------------------------------------------------------------
# Tiling helpers
# --------------------------------------------------------------------------
def _vmem_budget_bytes():
    """(data working-set budget, vmem_limit_bytes) for the current TPU gen."""
    cap = 64 * 1024 * 1024  # conservative fallback (v7x per-TC VMEM)
    try:
        info = pltpu.get_tpu_info()
        cap = int(getattr(info, "vmem_capacity_bytes", cap)) or cap
    except Exception:
        pass
    budget = cap // 2                       # double-buffered data working set
    limit = min(cap, max(budget + 8 * 1024 * 1024, (cap * 3) // 4))
    return budget, limit


def _pick_block_s(batch, seq, budget_bytes, bytes_per_row):
    """Largest seq-divisor (8-aligned or full) whose 2x-buffered tile fits."""
    cands = sorted(d for d in range(1, seq + 1)
                   if seq % d == 0 and (d % 8 == 0 or d == seq))
    fitting = [d for d in cands if 2 * d * bytes_per_row <= budget_bytes]
    if not fitting:
        fitting = cands[:1]
    best = fitting[-1]

    def steps(bs):
        return batch * (seq // bs)

    # Keep >= 2 grid steps so the parallel axes can be split across cores.
    if steps(best) < 2 and len(fitting) > 1:
        best = fitting[-2]
    # Mild preference for an even total step count (v7x has 2 TensorCores).
    if steps(best) % 2 == 1:
        for alt in reversed(fitting):
            if steps(alt) % 2 == 0 and alt * 2 >= best:
                best = alt
                break
    return best


# --------------------------------------------------------------------------
# Wrapper
# --------------------------------------------------------------------------
def rotary_position_embedding(query, key, seq_len, start_pos=0, *,
                              block_s=None, donate_qk=False):
    """Pallas implementation of RotaryPositionEmbedding.forward.

    query, key: (B, S, H, D) with interleaved complex pairs on the last dim.
    Returns (query_rot, key_rot) with the same shape / dtype as the inputs.
    """
    B, S, H, D = query.shape
    assert key.shape == (B, S, H, D)
    assert S == seq_len, "seq axis must match seq_len"
    assert D % 2 == 0
    Dh = D // 2
    HD = H * D

    # Tiny rotation tables in duplicated-cos / signed-sin layout, pre-tiled
    # over heads so the kernel block is lane-dense.  (The torch module builds a
    # 2**17-entry table and slices it; only the [start_pos, start_pos+seq_len)
    # slice is materialized here -- same values.)
    inv_freq = 1.0 / (10000.0 ** (jnp.arange(0, D, 2, dtype=jnp.float32)[:Dh] / D))
    pos = start_pos + jnp.arange(seq_len, dtype=jnp.float32)
    freqs = pos[:, None] * inv_freq[None, :]                   # (S, Dh)
    cos_dup = jnp.repeat(jnp.cos(freqs), 2, axis=-1)           # (S, D)
    sin = jnp.sin(freqs)
    sin_sgn = jnp.stack([-sin, sin], axis=-1).reshape(S, D)    # (S, D)
    cos_t = jnp.tile(cos_dup, (1, H))                          # (S, H*D)
    sin_t = jnp.tile(sin_sgn, (1, H))                          # (S, H*D)

    # Fold heads into lanes: (B, S, H, D) -> (B, S, H*D); contiguous => free.
    q2 = query.reshape(B, S, HD)
    k2 = key.reshape(B, S, HD)

    itemsize = query.dtype.itemsize
    budget, vmem_limit = _vmem_budget_bytes()
    if block_s is None:
        bytes_per_row = HD * (4 * itemsize + 2 * 4)   # q,k,oq,ok + cos,sin
        block_s = _pick_block_s(B, S, budget, bytes_per_row)
    assert S % block_s == 0
    nS = S // block_s

    # Seq axis OUTER, batch INNER: cos/sin block index is unchanged across all
    # inner batch steps -> Pallas skips their re-DMA (fetched once per s-block).
    qk_spec = pl.BlockSpec((None, block_s, HD), lambda si, bi: (bi, si, 0))
    tab_spec = pl.BlockSpec((block_s, HD), lambda si, bi: (si, 0))

    cost = pl.CostEstimate(
        flops=6 * B * S * HD,
        transcendentals=0,
        bytes_accessed=4 * B * S * HD * itemsize + 2 * S * HD * 4)

    q_out, k_out = pl.pallas_call(
        _rope_kernel,
        out_shape=(jax.ShapeDtypeStruct((B, S, HD), query.dtype),
                   jax.ShapeDtypeStruct((B, S, HD), key.dtype)),
        grid=(nS, B),
        in_specs=[tab_spec, tab_spec, qk_spec, qk_spec],
        out_specs=(qk_spec, qk_spec),
        compiler_params=pltpu.CompilerParams(
            dimension_semantics=("parallel", "parallel"),
            vmem_limit_bytes=int(vmem_limit)),
        cost_estimate=cost,
        input_output_aliases=({2: 0, 3: 1} if donate_qk else {}),
    )(cos_t, sin_t, q2, k2)

    return q_out.reshape(B, S, H, D), k_out.reshape(B, S, H, D)


# --------------------------------------------------------------------------
# Reference & test
# --------------------------------------------------------------------------
def _reference_rope(q, k, seq_len, start_pos):
    """Pure NumPy reference reproducing the PyTorch forward semantics."""
    q = np.asarray(q, np.float32)
    k = np.asarray(k, np.float32)
    B, S, H, D = q.shape
    Dh = D // 2
    inv_freq = 1.0 / (10000.0 ** (np.arange(0, D, 2, dtype=np.float32)[:Dh] / D))
    pos = np.arange(start_pos, start_pos + seq_len, dtype=np.float32)
    freqs = np.outer(pos, inv_freq)                       # (S, Dh)
    freqs_cis = np.exp(1j * freqs)[None, :, None, :]      # (1, S, 1, Dh)

    def rot(x):
        xc = x.reshape(B, S, H, Dh, 2)
        xc = xc[..., 0] + 1j * xc[..., 1]
        y = xc * freqs_cis
        out = np.stack([y.real, y.imag], axis=-1).reshape(B, S, H, D)
        return out.astype(np.float32)

    return rot(q), rot(k)


if __name__ == "__main__":
    B, S, H, D = 2, 8, 4, 128
    start_pos = 3

    rng = jax.random.PRNGKey(0)
    kq, kk = jax.random.split(rng)
    query = jax.random.normal(kq, (B, S, H, D), dtype=jnp.float32)
    key = jax.random.normal(kk, (B, S, H, D), dtype=jnp.float32)

    # f32 path
    q_out, k_out = rotary_position_embedding(query, key, seq_len=S,
                                             start_pos=start_pos)
    jax.block_until_ready((q_out, k_out))
    q_ref, k_ref = _reference_rope(query, key, S, start_pos)
    np.testing.assert_allclose(np.asarray(q_out), q_ref, rtol=1e-5, atol=1e-5)
    np.testing.assert_allclose(np.asarray(k_out), k_ref, rtol=1e-5, atol=1e-5)

    # bf16 I/O path (HBM traffic stays bf16; math is f32 inside the kernel)
    q16 = query.astype(jnp.bfloat16)
    k16 = key.astype(jnp.bfloat16)
    q16_out, k16_out = rotary_position_embedding(q16, k16, seq_len=S,
                                                 start_pos=start_pos)
    jax.block_until_ready((q16_out, k16_out))
    assert q16_out.dtype == jnp.bfloat16 and k16_out.dtype == jnp.bfloat16
    q16_ref, k16_ref = _reference_rope(q16.astype(jnp.float32),
                                       k16.astype(jnp.float32), S, start_pos)
    np.testing.assert_allclose(np.asarray(q16_out.astype(jnp.float32)),
                               q16_ref, rtol=5e-2, atol=5e-2)
    np.testing.assert_allclose(np.asarray(k16_out.astype(jnp.float32)),
                               k16_ref, rtol=5e-2, atol=5e-2)

    print("KERNEL_OK")
</pallas_src>

<mosaic_0001>
module attributes {stable_mosaic.version = 11 : i64} {
  func.func @_rope_kernel(%arg0: i32, %arg1: i32, %arg2: memref<8x512xf32, #tpu.memory_space<vmem>>, %arg3: memref<8x512xf32, #tpu.memory_space<vmem>>, %arg4: memref<1x8x512xf32, #tpu.memory_space<vmem>>, %arg5: memref<1x8x512xf32, #tpu.memory_space<vmem>>, %arg6: memref<1x8x512xf32, #tpu.memory_space<vmem>>, %arg7: memref<1x8x512xf32, #tpu.memory_space<vmem>>) attributes {dimension_semantics = [#tpu.dimension_semantics<parallel>, #tpu.dimension_semantics<parallel>], iteration_bounds = array<i64: 1, 2>, scalar_prefetch = 0 : i64, scratch_operands = 0 : i64, tpu.core_type = #tpu.core_type<tc>, window_params = [{transform_indices = @transform_0, window_bounds = array<i64: 8, 512>}, {transform_indices = @transform_1, window_bounds = array<i64: 8, 512>}, {transform_indices = @transform_2, window_bounds = array<i64: 1, 8, 512>}, {transform_indices = @transform_3, window_bounds = array<i64: 1, 8, 512>}, {transform_indices = @transform_4, window_bounds = array<i64: 1, 8, 512>}, {transform_indices = @transform_5, window_bounds = array<i64: 1, 8, 512>}]} {
    %c0 = arith.constant 0 : index
    %c0_0 = arith.constant 0 : index
    %0 = vector.load %arg2[%c0, %c0_0] : memref<8x512xf32, #tpu.memory_space<vmem>>, vector<8x512xf32>
    %c0_1 = arith.constant 0 : index
    %c0_2 = arith.constant 0 : index
    %1 = vector.load %arg3[%c0_1, %c0_2] : memref<8x512xf32, #tpu.memory_space<vmem>>, vector<8x512xf32>
    %2 = tpu.iota {dimensions = array<i32: 1>} : vector<1x512xi32>
    %c2_i32 = arith.constant 2 : i32
    %c0_i32 = arith.constant 0 : i32
    %3 = arith.cmpi eq, %c2_i32, %c0_i32 : i32
    %c1_i32 = arith.constant 1 : i32
    %4 = arith.select %3, %c1_i32, %c2_i32 : i32
    %5 = vector.broadcast %4 : i32 to vector<1x512xi32>
    %6 = arith.remsi %2, %5 : vector<1x512xi32>
    %c0_i32_3 = arith.constant 0 : i32
    %7 = vector.broadcast %c0_i32_3 : i32 to vector<1x512xi32>
    %8 = arith.cmpi ne, %6, %7 : vector<1x512xi32>
    %c0_i32_4 = arith.constant 0 : i32
    %9 = vector.broadcast %c0_i32_4 : i32 to vector<1x512xi32>
    %10 = arith.cmpi slt, %6, %9 : vector<1x512xi32>
    %c0_i32_5 = arith.constant 0 : i32
    %11 = arith.cmpi slt, %4, %c0_i32_5 : i32
    %12 = vector.broadcast %11 : i1 to vector<1x512xi1>
    %13 = vector.broadcast %12 : vector<1x512xi1> to vector<1x512xi1>
    %14 = arith.xori %10, %13 : vector<1x512xi1>
    %15 = arith.andi %14, %8 : vector<1x512xi1>
    %16 = vector.broadcast %4 : i32 to vector<1x512xi32>
    %17 = arith.addi %6, %16 : vector<1x512xi32>
    %18 = arith.select %15, %17, %6 : vector<1x512xi1>, vector<1x512xi32>
    %c0_i32_6 = arith.constant 0 : i32
    %19 = vector.broadcast %c0_i32_6 : i32 to vector<1x512xi32>
    %20 = arith.cmpi eq, %18, %19 : vector<1x512xi32>
    %c0_7 = arith.constant 0 : index
    %c0_8 = arith.constant 0 : index
    %c0_9 = arith.constant 0 : index
    %21 = vector.load %arg4[%c0_7, %c0_8, %c0_9] : memref<1x8x512xf32, #tpu.memory_space<vmem>>, vector<1x8x512xf32>
    %22 = vector.shape_cast %21 : vector<1x8x512xf32> to vector<8x512xf32>
    %c511_i32 = arith.constant 511 : i32
    %23 = tpu.dynamic_rotate %22 by %c511_i32 dim 1 : vector<8x512xf32>, i32 -> vector<8x512xf32>
    %c1_i32_10 = arith.constant 1 : i32
    %24 = tpu.dynamic_rotate %22 by %c1_i32_10 dim 1 : vector<8x512xf32>, i32 -> vector<8x512xf32>
    %25 = vector.shape_cast %20 : vector<1x512xi1> to vector<1x512xi1>
    %26 = vector.broadcast %25 : vector<1x512xi1> to vector<8x512xi1>
    %27 = arith.select %26, %23, %24 : vector<8x512xi1>, vector<8x512xf32>
    %28 = arith.mulf %22, %0 : vector<8x512xf32>
    %29 = arith.mulf %27, %1 : vector<8x512xf32>
    %30 = arith.addf %28, %29 : vector<8x512xf32>
    %c0_11 = arith.constant 0 : index
    %c0_12 = arith.constant 0 : index
    %c0_13 = arith.constant 0 : index
    %31 = vector.load %arg6[%c0_11, %c0_12, %c0_13] : memref<1x8x512xf32, #tpu.memory_space<vmem>>, vector<1x8x512xf32>
    %32 = vector.shape_cast %31 : vector<1x8x512xf32> to vector<8x512xf32>
    %33 = vector.shape_cast %30 : vector<8x512xf32> to vector<1x8x512xf32>
    tpu.vector_store %arg6[%c0_11, %c0_12, %c0_13], %33 {strides = array<i32>} : memref<1x8x512xf32, #tpu.memory_space<vmem>>, vector<1x8x512xf32>,
    %c0_14 = arith.constant 0 : index
    %c0_15 = arith.constant 0 : index
    %c0_16 = arith.constant 0 : index
    %34 = vector.load %arg5[%c0_14, %c0_15, %c0_16] : memref<1x8x512xf32, #tpu.memory_space<vmem>>, vector<1x8x512xf32>
    %35 = vector.shape_cast %34 : vector<1x8x512xf32> to vector<8x512xf32>
    %c511_i32_17 = arith.constant 511 : i32
    %36 = tpu.dynamic_rotate %35 by %c511_i32_17 dim 1 : vector<8x512xf32>, i32 -> vector<8x512xf32>
    %c1_i32_18 = arith.constant 1 : i32
    %37 = tpu.dynamic_rotate %35 by %c1_i32_18 dim 1 : vector<8x512xf32>, i32 -> vector<8x512xf32>
    %38 = vector.shape_cast %20 : vector<1x512xi1> to vector<1x512xi1>
    %39 = vector.broadcast %38 : vector<1x512xi1> to vector<8x512xi1>
    %40 = arith.select %39, %36, %37 : vector<8x512xi1>, vector<8x512xf32>
    %41 = arith.mulf %35, %0 : vector<8x512xf32>
    %42 = arith.mulf %40, %1 : vector<8x512xf32>
    %43 = arith.addf %41, %42 : vector<8x512xf32>
    %c0_19 = arith.constant 0 : index
    %c0_20 = arith.constant 0 : index
    %c0_21 = arith.constant 0 : index
    %44 = vector.load %arg7[%c0_19, %c0_20, %c0_21] : memref<1x8x512xf32, #tpu.memory_space<vmem>>, vector<1x8x512xf32>
    %45 = vector.shape_cast %44 : vector<1x8x512xf32> to vector<8x512xf32>
    %46 = vector.shape_cast %43 : vector<8x512xf32> to vector<1x8x512xf32>
    tpu.vector_store %arg7[%c0_19, %c0_20, %c0_21], %46 {strides = array<i32>} : memref<1x8x512xf32, #tpu.memory_space<vmem>>, vector<1x8x512xf32>,
    return
  }
  func.func @transform_0(%arg0: i32, %arg1: i32) -> (i32, i32) {
    %c0_i32 = arith.constant 0 : i32
    %c0_i32_0 = arith.constant 0 : i32
    return %arg0, %c0_i32 : i32, i32
  }
  func.func @transform_1(%arg0: i32, %arg1: i32) -> (i32, i32) {
    %c0_i32 = arith.constant 0 : i32
    %c0_i32_0 = arith.constant 0 : i32
    return %arg0, %c0_i32 : i32, i32
  }
  func.func @transform_2(%arg0: i32, %arg1: i32) -> (i32, i32, i32) {
    %c0_i32 = arith.constant 0 : i32
    %c0_i32_0 = arith.constant 0 : i32
    return %arg1, %arg0, %c0_i32 : i32, i32, i32
  }
  func.func @transform_3(%arg0: i32, %arg1: i32) -> (i32, i32, i32) {
    %c0_i32 = arith.constant 0 : i32
    %c0_i32_0 = arith.constant 0 : i32
    return %arg1, %arg0, %c0_i32 : i32, i32, i32
  }
  func.func @transform_4(%arg0: i32, %arg1: i32) -> (i32, i32, i32) {
    %c0_i32 = arith.constant 0 : i32
    %c0_i32_0 = arith.constant 0 : i32
    return %arg1, %arg0, %c0_i32 : i32, i32, i32
  }
  func.func @transform_5(%arg0: i32, %arg1: i32) -> (i32, i32, i32) {
    %c0_i32 = arith.constant 0 : i32
    %c0_i32_0 = arith.constant 0 : i32
    return %arg1, %arg0, %c0_i32 : i32, i32, i32
  }
}

</mosaic_0001>

<llo_original>
// kernel: tpu_custom_call.1
$region0: #{tpu_custom_call.1}
  #allocation0 [shape = 'u32[]', space=smem, size = 0x4, offset = 0x4, fixed_abs, tag = 'smem constant byte address 0x4 - core index']
  #allocation1 [shape = 'u32[72,128]{1,0:T(1,128)}', space=vmem, size = 0x9000, scoped, tag = 'internal scratch']
  %s0 = inlined_call_operand.hbm [shape: f32[8,512], index: 0, kind: input, shape index: {}]
  %s1 = inlined_call_operand.hbm [shape: f32[8,512], index: 1, kind: input, shape index: {}]
  %s2 = inlined_call_operand.hbm [shape: f32[2,8,512], index: 2, kind: input, shape index: {}]
  %s3 = inlined_call_operand.hbm [shape: f32[2,8,512], index: 3, kind: input, shape index: {}]
  %s4 = inlined_call_operand.hbm [shape: f32[2,8,512], index: 4, kind: output, shape index: {0}]
  %s5 = inlined_call_operand.hbm [shape: f32[2,8,512], index: 5, kind: output, shape index: {1}]
  %6 = xla_tuple %s4, %s5
  %s7 = sld [smem:[#allocation0]]
  $region73: #{tpu_custom_call.1} parent=0
    _
  %s9 = ssub.s32 1, %s7
  %s10 = scalar_select 0, %s9, %s7
  $region1: #{tpu_custom_call.1} parent=0
    #allocation2 [shape = 'u8[16384]{0}', space=vmem, size = 0x4000, scoped, tag = 'input window, operand 0, single buffered']
    #allocation3 [shape = 's32[2]{0}', space=sflag, size = 0x8, scoped, tag = 'scoped memory for tpu_custom_call.1']
    #allocation4 [shape = 's32[2]{0}', space=sflag, size = 0x8, scoped, tag = 'scoped memory for tpu_custom_call.1']
    #allocation5 [shape = 'u8[16384]{0}', space=vmem, size = 0x4000, scoped, tag = 'input window, operand 1, single buffered']
    #allocation6 [shape = 's32[1]{0}', space=sflag, size = 0x4, scoped, tag = 'scoped memory for tpu_custom_call.1']
    #allocation7 [shape = 'u8[32768]{0}', space=vmem, size = 0x8000, scoped, tag = 'input window, operand 2']
    #allocation8 [shape = 'u8[32768]{0}', space=vmem, size = 0x8000, scoped, tag = 'input window, operand 3']
    #allocation9 [shape = 'u8[32768]{0}', space=vmem, size = 0x8000, scoped, tag = 'output window, operand 0']
    #allocation10 [shape = 'u8[32768]{0}', space=vmem, size = 0x8000, scoped, tag = 'output window, operand 1']
    #allocation11 [shape = 's32[2]{0}', space=sflag, size = 0x8, scoped, tag = 'scoped memory for tpu_custom_call.1']
    %11 = vsyncpa [#allocation3], 0
    %12 = vsyncpa [#allocation6], 0
    %13 = vsyncpa [#allocation4], 0
    %s14 = scalar_lea.sflag [#allocation4], 1
    %15 = vsyncpa %s14, 0
    %16 = vsyncpa [#allocation11], 0
    %s17 = scalar_lea.sflag [#allocation11], 1
    %18 = vsyncpa %s17, 0
    loop: start=0, step=1, limit=4
    $region2: #{tpu_custom_call.1} parent=1 // loop_pre_header
      _
    $region3: #{tpu_custom_call.1} parent=1 // loop_header
      %s20 = sphi 0, %s24
      %p21 = scmp.ge.s32.totalorder %s20, 4
      %s27 = sphi 0, %s39
      %s28 = sphi 0, %s35
      %s29 = sphi 0, %s27
      %s30 = sphi 0, %s28
      %s31 = sphi 0, %s29
      %s32 = sphi 0, %s30
      %s42 = sphi 0, %s44
      %s45 = sphi 0, %s42
      %s46 = sphi 0, %s45
      %s62 = sphi 0, %s46
      %s68 = sphi 0, %s70
      %s71 = sphi 0, %s68
      %s72 = sphi 0, %s71
      %s88 = sphi 0, %s72
      %s96 = sphi 0, %s98
      %s99 = sphi 0, %s96
      %s100 = sphi 0, %s99
      %s116 = sphi 0, %s100
      %s124 = sphi 0, %s126
      %s127 = sphi 0, %s124
      %s128 = sphi 0, %s127
      %s144 = sphi 0, %s128
      %s152 = sphi 0, %s154
      %s155 = sphi 0, %s152
      %s156 = sphi 0, %s155
      %s172 = sphi 0, %s156
      %s180 = sphi 0, %s182
      %s183 = sphi 0, %s180
      %s184 = sphi 0, %s183
      %s200 = sphi 0, %s184
    $region4: #{tpu_custom_call.1} parent=1 // loop_header_branch
      %23 = sbr.rel (%p21) target = $region8
    $region5: #{tpu_custom_call.1} parent=1 // loop_body
      %s25 = ssub.s32 %s20, 1
      %s26 = ssub.s32 %s20, 2
      %s33 = sadd.s32 1, %s28
      %p34 = scmp.ge.s32.totalorder %s33, 2
      %s35 = scalar_select %p34, 0, %s33
      %s36 = sadd.s32 1, %s27
      %s37 = scalar_select %p34, %s36, %s27
      %p38 = scmp.ge.s32.totalorder %s37, 1
      %s39 = scalar_select %p38, 0, %s37
      %s40 = ssub.s32 %s27, %s39
      %p41 = scmp.eq.s32.totalorder %s40, 0
      %s43 = sadd.s32 %s42, 1
      %s44 = scalar_select %p41, %s42, %s43
      %p47 = pneg %p41
      %p48 = scmp.eq.s32.totalorder %s20, 1
      %p49 = por %p47, %p48
      %p50 = scmp.ne.s32.totalorder %s42, %s45
      %p51 = scmp.eq.s32.totalorder %s20, 0
      %p52 = por %p50, %p51
      %p53 = scmp.ne.s32.totalorder %s42, %s45
      %p54 = scmp.eq.s32.totalorder %s25, 1
      %p55 = por %p53, %p54
      %p56 = scmp.ne.s32.totalorder %s45, %s46
      %p57 = scmp.eq.s32.totalorder %s25, 0
      %p58 = por %p56, %p57
      %p59 = scmp.ne.s32.totalorder %s45, %s46
      %p60 = scmp.eq.s32.totalorder %s26, 1
      %p61 = por %p59, %p60
      %p63 = scmp.ne.s32.totalorder %s46, %s62
      %p64 = scmp.eq.s32.totalorder %s26, 0
      %p65 = por %p63, %p64
      %s66 = ssub.s32 %s27, %s39
      %p67 = scmp.eq.s32.totalorder %s66, 0
      %s69 = sadd.s32 %s68, 1
      %s70 = scalar_select %p67, %s68, %s69
      %p73 = pneg %p67
      %p74 = scmp.eq.s32.totalorder %s20, 1
      %p75 = por %p73, %p74
      %p76 = scmp.ne.s32.totalorder %s68, %s71
      %p77 = scmp.eq.s32.totalorder %s20, 0
      %p78 = por %p76, %p77
      %p79 = scmp.ne.s32.totalorder %s68, %s71
      %p80 = scmp.eq.s32.totalorder %s25, 1
      %p81 = por %p79, %p80
      %p82 = scmp.ne.s32.totalorder %s71, %s72
      %p83 = scmp.eq.s32.totalorder %s25, 0
      %p84 = por %p82, %p83
      %p85 = scmp.ne.s32.totalorder %s71, %s72
      %p86 = scmp.eq.s32.totalorder %s26, 1
      %p87 = por %p85, %p86
      %p89 = scmp.ne.s32.totalorder %s72, %s88
      %p90 = scmp.eq.s32.totalorder %s26, 0
      %p91 = por %p89, %p90
      %s92 = ssub.s32 %s28, %s35
      %s93 = ssub.s32 %s27, %s39
      %s94 = sor.u32 %s92, %s93
      %p95 = scmp.eq.s32.totalorder %s94, 0
      %s97 = sadd.s32 %s96, 1
      %s98 = scalar_select %p95, %s96, %s97
      %p101 = pneg %p95
      %p102 = scmp.eq.s32.totalorder %s20, 1
      %p103 = por %p101, %p102
      %p104 = scmp.ne.s32.totalorder %s96, %s99
      %p105 = scmp.eq.s32.totalorder %s20, 0
      %p106 = por %p104, %p105
      %p107 = scmp.ne.s32.totalorder %s96, %s99
      %p108 = scmp.eq.s32.totalorder %s25, 1
      %p109 = por %p107, %p108
      %p110 = scmp.ne.s32.totalorder %s99, %s100
      %p111 = scmp.eq.s32.totalorder %s25, 0
      %p112 = por %p110, %p111
      %p113 = scmp.ne.s32.totalorder %s99, %s100
      %p114 = scmp.eq.s32.totalorder %s26, 1
      %p115 = por %p113, %p114
      %p117 = scmp.ne.s32.totalorder %s100, %s116
      %p118 = scmp.eq.s32.totalorder %s26, 0
      %p119 = por %p117, %p118
      %s120 = ssub.s32 %s28, %s35
      %s121 = ssub.s32 %s27, %s39
      %s122 = sor.u32 %s120, %s121
      %p123 = scmp.eq.s32.totalorder %s122, 0
      %s125 = sadd.s32 %s124, 1
      %s126 = scalar_select %p123, %s124, %s125
      %p129 = pneg %p123
      %p130 = scmp.eq.s32.totalorder %s20, 1
      %p131 = por %p129, %p130
      %p132 = scmp.ne.s32.totalorder %s124, %s127
      %p133 = scmp.eq.s32.totalorder %s20, 0
      %p134 = por %p132, %p133
      %p135 = scmp.ne.s32.totalorder %s124, %s127
      %p136 = scmp.eq.s32.totalorder %s25, 1
      %p137 = por %p135, %p136
      %p138 = scmp.ne.s32.totalorder %s127, %s128
      %p139 = scmp.eq.s32.totalorder %s25, 0
      %p140 = por %p138, %p139
      %p141 = scmp.ne.s32.totalorder %s127, %s128
      %p142 = scmp.eq.s32.totalorder %s26, 1
      %p143 = por %p141, %p142
      %p145 = scmp.ne.s32.totalorder %s128, %s144
      %p146 = scmp.eq.s32.totalorder %s26, 0
      %p147 = por %p145, %p146
      %s148 = ssub.s32 %s28, %s35
      %s149 = ssub.s32 %s27, %s39
      %s150 = sor.u32 %s148, %s149
      %p151 = scmp.eq.s32.totalorder %s150, 0
      %s153 = sadd.s32 %s152, 1
      %s154 = scalar_select %p151, %s152, %s153
      %p157 = pneg %p151
      %p158 = scmp.eq.s32.totalorder %s20, 1
      %p159 = por %p157, %p158
      %p160 = scmp.ne.s32.totalorder %s152, %s155
      %p161 = scmp.eq.s32.totalorder %s20, 0
      %p162 = por %p160, %p161
      %p163 = scmp.ne.s32.totalorder %s152, %s155
      %p164 = scmp.eq.s32.totalorder %s25, 1
      %p165 = por %p163, %p164
      %p166 = scmp.ne.s32.totalorder %s155, %s156
      %p167 = scmp.eq.s32.totalorder %s25, 0
      %p168 = por %p166, %p167
      %p169 = scmp.ne.s32.totalorder %s155, %s156
      %p170 = scmp.eq.s32.totalorder %s26, 1
      %p171 = por %p169, %p170
      %p173 = scmp.ne.s32.totalorder %s156, %s172
      %p174 = scmp.eq.s32.totalorder %s26, 0
      %p175 = por %p173, %p174
      %s176 = ssub.s32 %s28, %s35
      %s177 = ssub.s32 %s27, %s39
      %s178 = sor.u32 %s176, %s177
      %p179 = scmp.eq.s32.totalorder %s178, 0
      %s181 = sadd.s32 %s180, 1
      %s182 = scalar_select %p179, %s180, %s181
      %p185 = pneg %p179
      %p186 = scmp.eq.s32.totalorder %s20, 1
      %p187 = por %p185, %p186
      %p188 = scmp.ne.s32.totalorder %s180, %s183
      %p189 = scmp.eq.s32.totalorder %s20, 0
      %p190 = por %p188, %p189
      %p191 = scmp.ne.s32.totalorder %s180, %s183
      %p192 = scmp.eq.s32.totalorder %s25, 1
      %p193 = por %p191, %p192
      %p194 = scmp.ne.s32.totalorder %s183, %s184
      %p195 = scmp.eq.s32.totalorder %s25, 0
      %p196 = por %p194, %p195
      %p197 = scmp.ne.s32.totalorder %s183, %s184
      %p198 = scmp.eq.s32.totalorder %s26, 1
      %p199 = por %p197, %p198
      %p201 = scmp.ne.s32.totalorder %s184, %s200
      %p202 = scmp.eq.s32.totalorder %s26, 0
      %p203 = por %p201, %p202
      %p204 = scmp.le.s32.totalorder 1, %s20
      %p205 = scmp.lt.s32.totalorder %s20, 3
      %p206 = pnand %p204, %p205
      %p207 = pneg %p206
      // Predicated region
      $region9: #{tpu_custom_call.1} parent=5 // pred_check
        _
      $region10: #{tpu_custom_call.1} parent=5 // pred_check_branch
        %209 = sbr.rel (%p206) target = $region12
      $region11: #{tpu_custom_call.1} parent=5 // pred_region
        %s210 = ssub.s32 %s20, 1
        // Predicated region
        $region13: #{tpu_custom_call.1} parent=11 // pred_check
          %p211 = pneg %p58
        $region14: #{tpu_custom_call.1} parent=11 // pred_check_branch
          %213 = sbr.rel (%p211) target = $region16
        $region15: #{tpu_custom_call.1} parent=11 // pred_region
          %215 = vsyncadd [#allocation3], 0
          %s216 = smul.addr %s29, 4
          %s217 = smul.addr %s216, 8
          %s218 = scalar_lea.hbm %s0, %s217
          %s220 = sshll.u32 %s218, 4
          %s221 = int_to_ptr.hbm [resolvable:$true] %s220
          %s222 = sshll.u32 [#allocation2], 4
          %s223 = int_to_ptr.vmem [resolvable:$true] %s222
          %225 = dma.hbm_to_vmem [thread:$0]  %s221, 512, %s223, [#allocation3]
        $region16: #{tpu_custom_call.1} parent=11 // pred_fallthru
          _
        // Predicated region
        $region17: #{tpu_custom_call.1} parent=11 // pred_check
          %p226 = pneg %p84
        $region18: #{tpu_custom_call.1} parent=11 // pred_check_branch
          %228 = sbr.rel (%p226) target = $region20
        $region19: #{tpu_custom_call.1} parent=11 // pred_region
          %230 = vsyncadd [#allocation6], 0
          %s231 = smul.addr %s29, 4
          %s232 = smul.addr %s231, 8
          %s233 = scalar_lea.hbm %s1, %s232
          %s235 = sshll.u32 %s233, 4
          %s236 = int_to_ptr.hbm [resolvable:$true] %s235
          %s237 = sshll.u32 [#allocation5], 4
          %s238 = int_to_ptr.vmem [resolvable:$true] %s237
          %240 = dma.hbm_to_vmem [thread:$0]  %s236, 512, %s238, [#allocation6]
        $region20: #{tpu_custom_call.1} parent=11 // pred_fallthru
          _
      $region12: #{tpu_custom_call.1} parent=5 // pred_fallthru
        _
      %p241 = scmp.lt.s32.totalorder %s20, 2
      // Predicated region
      $region21: #{tpu_custom_call.1} parent=5 // pred_check
        %p242 = pneg %p241
      $region22: #{tpu_custom_call.1} parent=5 // pred_check_branch
        %244 = sbr.rel (%p242) target = $region24
      $region23: #{tpu_custom_call.1} parent=5 // pred_region
        // Predicated region
        $region25: #{tpu_custom_call.1} parent=23 // pred_check
          %p245 = pneg %p106
        $region26: #{tpu_custom_call.1} parent=23 // pred_check_branch
          %247 = sbr.rel (%p245) target = $region28
        $region27: #{tpu_custom_call.1} parent=23 // pred_region
          %s248 = sand.u32 %s20, 1
          %s249 = scalar_lea.sflag [#allocation3], %s248
          %s250 = sand.u32 %s96, 1
          %s251 = smul.addr %s250, 32
          %s252 = scalar_lea.vmem [#allocation7], %s251
          %254 = vsyncadd %s249, 0
          %s255 = smul.addr %s27, 4
          %s256 = smul.addr %s28, 4
          %s257 = sadd.s32 %s255, %s256
          %s258 = smul.addr %s257, 8
          %s259 = scalar_lea.hbm %s2, %s258
          %s261 = sshll.u32 %s259, 4
          %s262 = int_to_ptr.hbm [resolvable:$true] %s261
          %s263 = sshll.u32 %s252, 4
          %s264 = int_to_ptr.vmem [resolvable:$true] %s263
          %266 = dma.hbm_to_vmem [thread:$0]  %s262, 512, %s264, %s249
        $region28: #{tpu_custom_call.1} parent=23 // pred_fallthru
          _
        // Predicated region
        $region29: #{tpu_custom_call.1} parent=23 // pred_check
          %p267 = pneg %p134
        $region30: #{tpu_custom_call.1} parent=23 // pred_check_branch
          %269 = sbr.rel (%p267) target = $region32
        $region31: #{tpu_custom_call.1} parent=23 // pred_region
          %s270 = sand.u32 %s20, 1
          %s271 = scalar_lea.sflag [#allocation3], %s270
          %s272 = sand.u32 %s124, 1
          %s273 = smul.addr %s272, 32
          %s274 = scalar_lea.vmem [#allocation8], %s273
          %276 = vsyncadd %s271, 0
          %s277 = smul.addr %s27, 4
          %s278 = smul.addr %s28, 4
          %s279 = sadd.s32 %s277, %s278
          %s280 = smul.addr %s279, 8
          %s281 = scalar_lea.hbm %s3, %s280
          %s283 = sshll.u32 %s281, 4
          %s284 = int_to_ptr.hbm [resolvable:$true] %s283
          %s285 = sshll.u32 %s274, 4
          %s286 = int_to_ptr.vmem [resolvable:$true] %s285
          %288 = dma.hbm_to_vmem [thread:$0]  %s284, 512, %s286, %s271
        $region32: #{tpu_custom_call.1} parent=23 // pred_fallthru
          _
      $region24: #{tpu_custom_call.1} parent=5 // pred_fallthru
        _
      %p289 = scmp.le.s32.totalorder 1, %s20
      %p290 = scmp.lt.s32.totalorder %s20, 3
      %p291 = pnand %p289, %p290
      %p292 = pneg %p291
      // Predicated region
      $region33: #{tpu_custom_call.1} parent=5 // pred_check
        _
      $region34: #{tpu_custom_call.1} parent=5 // pred_check_branch
        %294 = sbr.rel (%p291) target = $region36
      $region35: #{tpu_custom_call.1} parent=5 // pred_region
        %s295 = ssub.s32 %s20, 1
        // Predicated region
        $region37: #{tpu_custom_call.1} parent=35 // pred_check
          %p296 = pneg %p58
        $region38: #{tpu_custom_call.1} parent=35 // pred_check_branch
          %298 = sbr.rel (%p296) target = $region40
        $region39: #{tpu_custom_call.1} parent=35 // pred_region
          %300 = dma.done [#allocation3], 512
        $region40: #{tpu_custom_call.1} parent=35 // pred_fallthru
          _
        // Predicated region
        $region41: #{tpu_custom_call.1} parent=35 // pred_check
          %p301 = pneg %p84
        $region42: #{tpu_custom_call.1} parent=35 // pred_check_branch
          %303 = sbr.rel (%p301) target = $region44
        $region43: #{tpu_custom_call.1} parent=35 // pred_region
          %305 = dma.done [#allocation6], 512
        $region44: #{tpu_custom_call.1} parent=35 // pred_fallthru
          _
        %s306 = sand.u32 %s25, 1
        %s307 = scalar_lea.sflag [#allocation3], %s306
        %s308 = sand.u32 %s99, 1
        %s309 = smul.addr %s308, 32
        %s310 = scalar_lea.vmem [#allocation7], %s309
        // Predicated region
        $region45: #{tpu_custom_call.1} parent=35 // pred_check
          %p311 = pneg %p112
        $region46: #{tpu_custom_call.1} parent=35 // pred_check_branch
          %313 = sbr.rel (%p311) target = $region48
        $region47: #{tpu_custom_call.1} parent=35 // pred_region
          %315 = dma.done %s307, 512
        $region48: #{tpu_custom_call.1} parent=35 // pred_fallthru
          _
        %s316 = sand.u32 %s25, 1
        %s317 = scalar_lea.sflag [#allocation3], %s316
        %s318 = sand.u32 %s127, 1
        %s319 = smul.addr %s318, 32
        %s320 = scalar_lea.vmem [#allocation8], %s319
        // Predicated region
        $region49: #{tpu_custom_call.1} parent=35 // pred_check
          %p321 = pneg %p140
        $region50: #{tpu_custom_call.1} parent=35 // pred_check_branch
          %323 = sbr.rel (%p321) target = $region52
        $region51: #{tpu_custom_call.1} parent=35 // pred_region
          %325 = dma.done %s317, 512
        $region52: #{tpu_custom_call.1} parent=35 // pred_fallthru
          _
        %p326 = pneg %p58
        %p327 = pneg %p55
        %p328 = pneg %p84
        %p329 = pneg %p81
        %s330 = sand.u32 %s25, 1
        %s331 = scalar_lea.sflag [#allocation3], %s330
        %s332 = sand.u32 %s99, 1
        %s333 = smul.addr %s332, 32
        %s334 = scalar_lea.vmem [#allocation7], %s333
        %p335 = pneg %p112
        %p336 = pneg %p109
        %s337 = sand.u32 %s25, 1
        %s338 = scalar_lea.sflag [#allocation3], %s337
        %s339 = sand.u32 %s127, 1
        %s340 = smul.addr %s339, 32
        %s341 = scalar_lea.vmem [#allocation8], %s340
        %p342 = pneg %p140
        %p343 = pneg %p137
        %p344 = pneg %p168
        %p345 = pneg %p165
        %s346 = sand.u32 %s155, 1
        %s347 = scalar_lea.sflag [#allocation4], %s346
        %s348 = sand.u32 %s155, 1
        %s349 = smul.addr %s348, 32
        %s350 = scalar_lea.vmem [#allocation9], %s349
        %p351 = pneg %p196
        %p352 = pneg %p193
        %s353 = sand.u32 %s183, 1
        %s354 = scalar_lea.sflag [#allocation11], %s353
        %s355 = sand.u32 %s183, 1
        %s356 = smul.addr %s355, 32
        %s357 = scalar_lea.vmem [#allocation10], %s356
        %v358 = vld [vmem:[#allocation2] sm:$0xff]
        %v359 = vld [vmem:[#allocation2 + $0x8] sm:$0xff]
        %v360 = vld [vmem:[#allocation2 + $0x10] sm:$0xff]
        %v361 = vld [vmem:[#allocation2 + $0x18] sm:$0xff]
        %v362 = vld [vmem:[#allocation5] sm:$0xff]
        %v363 = vld [vmem:[#allocation5 + $0x8] sm:$0xff]
        %v364 = vld [vmem:[#allocation5 + $0x10] sm:$0xff]
        %v365 = vld [vmem:[#allocation5 + $0x18] sm:$0xff]
        %v366 = vlaneseq
        %v367 = vand.u32 %v366, 127
        %v368 = vadd.s32 %v367, 128
        %v369 = vadd.s32 %v367, 256
        %v370 = vadd.s32 %v367, 384
        %vm371 = vcmp.lt.s32.totalorder %v367, 0
        %v372 = vsub.s32 0, %v367
        %v373 = vsel %vm371, %v372, %v367
        %v374 = vshrl.u32 %v373, 1
        %v375 = vand.u32 %v373, 1
        %v376 = vsub.s32 0, %v375
        %v377 = vsel %vm371, %v376, %v375
        %vm378 = vcmp.lt.s32.totalorder %v368, 0
        %v379 = vsub.s32 0, %v368
        %v380 = vsel %vm378, %v379, %v368
        %v381 = vshrl.u32 %v380, 1
        %v382 = vand.u32 %v380, 1
        %v383 = vsub.s32 0, %v382
        %v384 = vsel %vm378, %v383, %v382
        %vm385 = vcmp.lt.s32.totalorder %v369, 0
        %v386 = vsub.s32 0, %v369
        %v387 = vsel %vm385, %v386, %v369
        %v388 = vshrl.u32 %v387, 1
        %v389 = vand.u32 %v387, 1
        %v390 = vsub.s32 0, %v389
        %v391 = vsel %vm385, %v390, %v389
        %vm392 = vcmp.lt.s32.totalorder %v370, 0
        %v393 = vsub.s32 0, %v370
        %v394 = vsel %vm392, %v393, %v370
        %v395 = vshrl.u32 %v394, 1
        %v396 = vand.u32 %v394, 1
        %v397 = vsub.s32 0, %v396
        %v398 = vsel %vm392, %v397, %v396
        %vm399 = vcmp.ne.s32.totalorder %v377, 0
        %vm400 = vcmp.ne.s32.totalorder %v384, 0
        %vm401 = vcmp.ne.s32.totalorder %v391, 0
        %vm402 = vcmp.ne.s32.totalorder %v398, 0
        %vm403 = vcmp.lt.s32.totalorder %v377, 0
        %vm404 = vcmp.lt.s32.totalorder %v384, 0
        %vm405 = vcmp.lt.s32.totalorder %v391, 0
        %vm406 = vcmp.lt.s32.totalorder %v398, 0
        %vm407 = vmand %vm403, %vm399
        %vm408 = vmand %vm404, %vm400
        %vm409 = vmand %vm405, %vm401
        %vm410 = vmand %vm406, %vm402
        %v411 = vadd.s32 %v377, 2
        %v412 = vadd.s32 %v384, 2
        %v413 = vadd.s32 %v391, 2
        %v414 = vadd.s32 %v398, 2
        %v415 = vsel %vm407, %v411, %v377
        %v416 = vsel %vm408, %v412, %v384
        %v417 = vsel %vm409, %v413, %v391
        %v418 = vsel %vm410, %v414, %v398
        %vm419 = vcmp.eq.s32.totalorder %v415, 0
        %vm420 = vcmp.eq.s32.totalorder %v416, 0
        %vm421 = vcmp.eq.s32.totalorder %v417, 0
        %vm422 = vcmp.eq.s32.totalorder %v418, 0
        %v423 = vld [vmem:[%s310] sm:$0xff]
        %v424 = vld [vmem:[%s310 + $0x8] sm:$0xff]
        %v425 = vld [vmem:[%s310 + $0x10] sm:$0xff]
        %v426 = vld [vmem:[%s310 + $0x18] sm:$0xff]
        %427 = vrot.lane.b32.xlu0 %v423, 127
        %v428 = vpop.permute.xlu0 %427
        %429 = vrot.lane.b32.xlu0 %v424, 127
        %v430 = vpop.permute.xlu0 %429
        %431 = vrot.lane.b32.xlu0 %v425, 127
        %v432 = vpop.permute.xlu0 %431
        %433 = vrot.lane.b32.xlu0 %v426, 127
        %v434 = vpop.permute.xlu0 %433
        %vm435 = vcmp.lt.s32.totalorder %v367, 127
        %v436 = vsel %vm435, %v432, %v434
        %v437 = vsel %vm435, %v430, %v432
        %v438 = vsel %vm435, %v428, %v430
        %v439 = vsel %vm435, %v434, %v428
        %440 = vrot.lane.b32.xlu0 %v423, 1
        %v441 = vpop.permute.xlu0 %440
        %442 = vrot.lane.b32.xlu0 %v424, 1
        %v443 = vpop.permute.xlu0 %442
        %444 = vrot.lane.b32.xlu0 %v425, 1
        %v445 = vpop.permute.xlu0 %444
        %446 = vrot.lane.b32.xlu0 %v426, 1
        %v447 = vpop.permute.xlu0 %446
        %vm448 = vcmp.lt.s32.totalorder %v367, 1
        %v449 = vsel %vm448, %v445, %v447
        %v450 = vsel %vm448, %v443, %v445
        %v451 = vsel %vm448, %v441, %v443
        %v452 = vsel %vm448, %v447, %v441
        %v453 = vsel %vm419, 1, 0
        %v454 = vsel %vm420, 1, 0
        %v455 = vsel %vm421, 1, 0
        %v456 = vsel %vm422, 1, 0
        %vm457 = vcmp.eq.s32.totalorder %v453, 1
        %vm458 = vcmp.eq.s32.totalorder %v454, 1
        %vm459 = vcmp.eq.s32.totalorder %v455, 1
        %vm460 = vcmp.eq.s32.totalorder %v456, 1
        %v461 = vsel %vm457, %v438, %v452
        %v462 = vsel %vm458, %v437, %v451
        %v463 = vsel %vm459, %v436, %v450
        %v464 = vsel %vm460, %v439, %v449
        %v465 = vmul.f32 %v423, %v358
        %v466 = vmul.f32 %v424, %v359
        %v467 = vmul.f32 %v425, %v360
        %v468 = vmul.f32 %v426, %v361
        %v469 = vmul.f32 %v461, %v362
        %v470 = vmul.f32 %v462, %v363
        %v471 = vmul.f32 %v463, %v364
        %v472 = vmul.f32 %v464, %v365
        %v473 = vadd.f32 %v465, %v469
        %v474 = vadd.f32 %v466, %v470
        %v475 = vadd.f32 %v467, %v471
        %v476 = vadd.f32 %v468, %v472
        %477 = vst [vmem:[%s350] sm:$0xff] %v473
        %478 = vst [vmem:[%s350 + $0x8] sm:$0xff] %v474
        %479 = vst [vmem:[%s350 + $0x10] sm:$0xff] %v475
        %480 = vst [vmem:[%s350 + $0x18] sm:$0xff] %v476
        %v481 = vld [vmem:[%s320] sm:$0xff]
        %v482 = vld [vmem:[%s320 + $0x8] sm:$0xff]
        %v483 = vld [vmem:[%s320 + $0x10] sm:$0xff]
        %v484 = vld [vmem:[%s320 + $0x18] sm:$0xff]
        %485 = vrot.lane.b32.xlu0 %v481, 127
        %v486 = vpop.permute.xlu0 %485
        %487 = vrot.lane.b32.xlu0 %v482, 127
        %v488 = vpop.permute.xlu0 %487
        %489 = vrot.lane.b32.xlu0 %v483, 127
        %v490 = vpop.permute.xlu0 %489
        %491 = vrot.lane.b32.xlu0 %v484, 127
        %v492 = vpop.permute.xlu0 %491
        %v493 = vsel %vm435, %v490, %v492
        %v494 = vsel %vm435, %v488, %v490
        %v495 = vsel %vm435, %v486, %v488
        %v496 = vsel %vm435, %v492, %v486
        %497 = vrot.lane.b32.xlu0 %v481, 1
        %v498 = vpop.permute.xlu0 %497
        %499 = vrot.lane.b32.xlu0 %v482, 1
        %v500 = vpop.permute.xlu0 %499
        %501 = vrot.lane.b32.xlu0 %v483, 1
        %v502 = vpop.permute.xlu0 %501
        %503 = vrot.lane.b32.xlu0 %v484, 1
        %v504 = vpop.permute.xlu0 %503
        %v505 = vsel %vm448, %v502, %v504
        %v506 = vsel %vm448, %v500, %v502
        %v507 = vsel %vm448, %v498, %v500
        %v508 = vsel %vm448, %v504, %v498
        %v509 = vsel %vm457, %v495, %v508
        %v510 = vsel %vm458, %v494, %v507
        %v511 = vsel %vm459, %v493, %v506
        %v512 = vsel %vm460, %v496, %v505
        %v513 = vmul.f32 %v481, %v358
        %v514 = vmul.f32 %v482, %v359
        %v515 = vmul.f32 %v483, %v360
        %v516 = vmul.f32 %v484, %v361
        %v517 = vmul.f32 %v509, %v362
        %v518 = vmul.f32 %v510, %v363
        %v519 = vmul.f32 %v511, %v364
        %v520 = vmul.f32 %v512, %v365
        %v521 = vadd.f32 %v513, %v517
        %v522 = vadd.f32 %v514, %v518
        %v523 = vadd.f32 %v515, %v519
        %v524 = vadd.f32 %v516, %v520
        %525 = vst [vmem:[%s357] sm:$0xff] %v521
        %526 = vst [vmem:[%s357 + $0x8] sm:$0xff] %v522
        %527 = vst [vmem:[%s357 + $0x10] sm:$0xff] %v523
        %528 = vst [vmem:[%s357 + $0x18] sm:$0xff] %v524
        %s529 = sand.u32 %s155, 1
        %s530 = scalar_lea.sflag [#allocation4], %s529
        %s531 = sand.u32 %s155, 1
        %s532 = smul.addr %s531, 32
        %s533 = scalar_lea.vmem [#allocation9], %s532
        %s534 = sand.u32 %s183, 1
        %s535 = scalar_lea.sflag [#allocation11], %s534
        %s536 = sand.u32 %s183, 1
        %s537 = smul.addr %s536, 32
        %s538 = scalar_lea.vmem [#allocation10], %s537
        // Predicated region
        $region53: #{tpu_custom_call.1} parent=35 // pred_check
          %p539 = pneg %p165
        $region54: #{tpu_custom_call.1} parent=35 // pred_check_branch
          %541 = sbr.rel (%p539) target = $region56
        $region55: #{tpu_custom_call.1} parent=35 // pred_region
          %543 = vsyncadd %s530, 0
          %s544 = smul.addr %s29, 4
          %s545 = smul.addr %s30, 4
          %s546 = sadd.s32 %s544, %s545
          %s547 = smul.addr %s546, 8
          %s548 = scalar_lea.hbm %s4, %s547
          %s550 = sshll.u32 %s533, 4
          %s551 = int_to_ptr.vmem [resolvable:$true] %s550
          %s552 = sshll.u32 %s548, 4
          %s553 = int_to_ptr.hbm [resolvable:$true] %s552
          %555 = dma.vmem_to_hbm [thread:$0]  %s551, 512, %s553, %s530
        $region56: #{tpu_custom_call.1} parent=35 // pred_fallthru
          _
        // Predicated region
        $region57: #{tpu_custom_call.1} parent=35 // pred_check
          %p556 = pneg %p193
        $region58: #{tpu_custom_call.1} parent=35 // pred_check_branch
          %558 = sbr.rel (%p556) target = $region60
        $region59: #{tpu_custom_call.1} parent=35 // pred_region
          %560 = vsyncadd %s535, 0
          %s561 = smul.addr %s29, 4
          %s562 = smul.addr %s30, 4
          %s563 = sadd.s32 %s561, %s562
          %s564 = smul.addr %s563, 8
          %s565 = scalar_lea.hbm %s5, %s564
          %s567 = sshll.u32 %s538, 4
          %s568 = int_to_ptr.vmem [resolvable:$true] %s567
          %s569 = sshll.u32 %s565, 4
          %s570 = int_to_ptr.hbm [resolvable:$true] %s569
          %572 = dma.vmem_to_hbm [thread:$0]  %s568, 512, %s570, %s535
        $region60: #{tpu_custom_call.1} parent=35 // pred_fallthru
          _
      $region36: #{tpu_custom_call.1} parent=5 // pred_fallthru
        _
      %p573 = scmp.le.s32.totalorder 2, %s20
      // Predicated region
      $region61: #{tpu_custom_call.1} parent=5 // pred_check
        %p574 = pneg %p573
      $region62: #{tpu_custom_call.1} parent=5 // pred_check_branch
        %576 = sbr.rel (%p574) target = $region64
      $region63: #{tpu_custom_call.1} parent=5 // pred_region
        %s577 = ssub.s32 %s20, 2
        // Predicated region
        $region65: #{tpu_custom_call.1} parent=63 // pred_check
          %p578 = pneg %p171
        $region66: #{tpu_custom_call.1} parent=63 // pred_check_branch
          %580 = sbr.rel (%p578) target = $region68
        $region67: #{tpu_custom_call.1} parent=63 // pred_region
          %s581 = sand.u32 %s156, 1
          %s582 = scalar_lea.sflag [#allocation4], %s581
          %s583 = sand.u32 %s156, 1
          %s584 = smul.addr %s583, 32
          %s585 = scalar_lea.vmem [#allocation9], %s584
          %587 = dma.done %s582, 512
        $region68: #{tpu_custom_call.1} parent=63 // pred_fallthru
          _
        // Predicated region
        $region69: #{tpu_custom_call.1} parent=63 // pred_check
          %p588 = pneg %p199
        $region70: #{tpu_custom_call.1} parent=63 // pred_check_branch
          %590 = sbr.rel (%p588) target = $region72
        $region71: #{tpu_custom_call.1} parent=63 // pred_region
          %s591 = sand.u32 %s184, 1
          %s592 = scalar_lea.sflag [#allocation11], %s591
          %s593 = sand.u32 %s184, 1
          %s594 = smul.addr %s593, 32
          %s595 = scalar_lea.vmem [#allocation10], %s594
          %597 = dma.done %s592, 512
        $region72: #{tpu_custom_call.1} parent=63 // pred_fallthru
          _
      $region64: #{tpu_custom_call.1} parent=5 // pred_fallthru
        _
    $region6: #{tpu_custom_call.1} parent=1 // loop_footer
      %s24 = sadd.s32 1, %s20
    $region7: #{tpu_custom_call.1} parent=1 // loop_footer_branch
      %19 = sbr.rel target = $region3
    $region8: #{tpu_custom_call.1} parent=1 // loop_exit
      _
    %598 = vsyncpa [#allocation3], 1
    %s599 = scalar_lea.sflag [#allocation3], 1
    %600 = vsyncpa %s599, 1
    %601 = vsyncpa [#allocation6], 1
    %602 = vsyncpa [#allocation4], 1
    %s603 = scalar_lea.sflag [#allocation4], 1
    %604 = vsyncpa %s603, 1
    %605 = vsyncpa [#allocation11], 1
    %s606 = scalar_lea.sflag [#allocation11], 1
    %607 = vsyncpa %s606, 1

</llo_original>
